<compile_context>
chip_gen: v5e
topology: v5e:2x2
jax: 0.10.0
libtpu: 0.0.40
codegen_flags: <defaults>
</compile_context>

<pallas_src>
import functools
import math

import jax
import jax.numpy as jnp
from jax import lax
from jax.experimental import pallas as pl
from jax.experimental.pallas import tpu as pltpu

_MASK_VALUE = -0.7 * float(jnp.finfo(jnp.float32).max)   # finite "−inf" (no NaN risk)


def _round_up(x, m):
    return ((x + m - 1) // m) * m


# --------------------------------------------------------------------------- #
# Kernel 1: fused QKV projection (+ bias).  1/sqrt(d_out) pre-folded into Wq/bq.
# --------------------------------------------------------------------------- #
def _qkv_proj_kernel(x_ref, w_ref, b_ref, q_ref, k_ref, v_ref, *, d_pad):
    x = x_ref[0]                      # (proj_m, d_in), compute dtype
    w = w_ref[...]                    # (d_in, 3*d_pad) fused [Wq*scale | Wk | Wv]
    qkv = jnp.dot(x, w, preferred_element_type=jnp.float32)   # one wide MXU push
    qkv = qkv + b_ref[...]            # (1, 3*d_pad) broadcast bias (zeros if disabled)
    q_ref[0] = qkv[:, 0 * d_pad:1 * d_pad].astype(q_ref.dtype)
    k_ref[0] = qkv[:, 1 * d_pad:2 * d_pad].astype(k_ref.dtype)
    v_ref[0] = qkv[:, 2 * d_pad:3 * d_pad].astype(v_ref.dtype)


# --------------------------------------------------------------------------- #
# Kernel 2: flash-style causal attention with online softmax
# --------------------------------------------------------------------------- #
def _flash_causal_kernel(q_ref, k_ref, v_ref, o_ref, m_ref, l_ref, acc_ref, *,
                         block_q, block_k, dropout_p, dropout_seed):
    b = pl.program_id(0)
    qi = pl.program_id(1)
    ki = pl.program_id(2)
    n_k = pl.num_programs(2)

    q_start = qi * block_q
    k_start = ki * block_k

    @pl.when(ki == 0)
    def _init():
        m_ref[...] = jnp.full_like(m_ref, -jnp.inf)
        l_ref[...] = jnp.zeros_like(l_ref)
        acc_ref[...] = jnp.zeros_like(acc_ref)

    def _tile_update(masked):
        q = q_ref[0]                                   # (tq, d) -- Q pre-scaled via Wq
        k = k_ref[0]                                   # (tk, d)
        v = v_ref[0]                                   # (tk, d)

        # Contract the last (lane) dim of both operands -> no keys.T / XLU relayout.
        s = lax.dot_general(
            q, k, dimension_numbers=(((1,), (1,)), ((), ())),
            preferred_element_type=jnp.float32)        # (tq, tk) f32

        if masked:  # only traced for diagonal-crossing tiles
            row = q_start + lax.broadcasted_iota(jnp.int32, (block_q, block_k), 0)
            col = k_start + lax.broadcasted_iota(jnp.int32, (block_q, block_k), 1)
            s = jnp.where(col <= row, s, _MASK_VALUE)

        m_prev = m_ref[...]
        m_new = jnp.maximum(m_prev, jnp.max(s, axis=-1, keepdims=True))
        alpha = jnp.exp(m_prev - m_new)
        p = jnp.exp(s - m_new)                          # (tq, tk) f32
        l_ref[...] = alpha * l_ref[...] + jnp.sum(p, axis=-1, keepdims=True)

        if dropout_p > 0.0:  # static: only traced in training mode
            # torch drops the *normalized* weights; since the row-sum l above is
            # accumulated from pre-dropout p, dropping p here and normalizing the
            # context afterwards is mathematically identical.
            # Counter-based hash PRNG (portable jnp uint32 ops: works on TPU and
            # in interpret mode, unlike pltpu.prng_*).  Stream differs from torch.
            row = q_start + lax.broadcasted_iota(jnp.int32, (block_q, block_k), 0)
            col = k_start + lax.broadcasted_iota(jnp.int32, (block_q, block_k), 1)
            seed_u = jnp.uint32(dropout_seed & 0xFFFFFFFF)
            salt = (b + 1).astype(jnp.uint32) * jnp.uint32(0x9E3779B9) ^ seed_u
            bits = (row.astype(jnp.uint32) * jnp.uint32(0x9E3779B1)
                    + col.astype(jnp.uint32) * jnp.uint32(0x85EBCA77)
                    + salt)
            bits = bits ^ (bits >> 16)
            bits = bits * jnp.uint32(0x7FEB352D)
            bits = bits ^ (bits >> 15)
            bits = bits * jnp.uint32(0x846CA68B)
            bits = bits ^ (bits >> 16)
            thresh = jnp.uint32(min(int(round(dropout_p * (2 ** 32))), 2 ** 32 - 1))
            keep = bits >= thresh                       # P(keep) = 1 - p
            p = jnp.where(keep, p * jnp.float32(1.0 / (1.0 - dropout_p)), 0.0)

        acc_ref[...] = alpha * acc_ref[...] + jnp.dot(
            p.astype(v.dtype), v, preferred_element_type=jnp.float32)
        m_ref[...] = m_new

    # Fully-future (upper-triangular) kv tiles: skip all compute.  Their K/V block
    # index is also clamped in the index_map, so their DMA is skipped too.
    not_future = k_start <= q_start + (block_q - 1)
    # Only diagonal-crossing tiles need the iota/compare/select mask work.
    crosses_diag = k_start + (block_k - 1) > q_start

    @pl.when(jnp.logical_and(not_future, crosses_diag))
    def _compute_masked():
        _tile_update(masked=True)

    @pl.when(jnp.logical_and(not_future, jnp.logical_not(crosses_diag)))
    def _compute_plain():
        _tile_update(masked=False)

    @pl.when(ki == n_k - 1)
    def _finalize():
        # Normalize the (tq, d) context, not the (tq, tk) weights: EUP reciprocal
        # (+ one Newton step for full f32 accuracy) then a small VPU multiply.
        l = l_ref[...]
        inv_l = pl.reciprocal(l, approx=True)
        inv_l = inv_l * (2.0 - l * inv_l)
        o_ref[0] = (acc_ref[...] * inv_l).astype(o_ref.dtype)


# --------------------------------------------------------------------------- #
# Wrapper
# --------------------------------------------------------------------------- #
def causal_attention(x, w_query, w_key, w_value,
                     b_query=None, b_key=None, b_value=None, *,
                     dropout_p=0.0, dropout_seed=0,
                     block_q=256, block_k=256, compute_dtype=None):
    """Forward pass of CausalAttention.

    x: (B, S, d_in); weights: (d_in, d_out); optional biases: (d_out,).
    dropout_p > 0 reproduces nn.Dropout(p) in training mode (same keep-prob and
    1/(1-p) scaling; different RNG stream than torch).  dropout_p == 0.0 is the
    eval-mode / identity path.  compute_dtype=jnp.bfloat16 runs all matmuls on
    the full-rate MXU path (f32 accumulation / f32 softmax kept).  Returns
    (B, S, d_out) in x.dtype.
    """
    B, S, d_in = x.shape
    d_out = w_query.shape[1]
    out_dtype = x.dtype
    if compute_dtype is None:
        compute_dtype = x.dtype

    # Pad head dim to full 128-lane registers and the sequence to the tile size so
    # every block is (8,128)-aligned and all stores are lane-dense (no vst.msk).
    d_pad = _round_up(d_out, 128)
    s_min = _round_up(S, 128)
    block_q = min(block_q, s_min)           # don't over-pad tiny sequences
    block_k = min(block_k, s_min)
    s_tile = math.lcm(block_q, block_k)
    s_pad = _round_up(S, s_tile)

    q_scale = 1.0 / float(d_out) ** 0.5

    x_p = jnp.pad(x.astype(compute_dtype), ((0, 0), (0, s_pad - S), (0, 0)))

    def pad_w(w, scale=1.0):
        w = (w.astype(jnp.float32) * scale).astype(compute_dtype)
        return jnp.pad(w, ((0, 0), (0, d_pad - d_out)))

    def pad_b(bvec, scale=1.0):
        if bvec is None:
            return jnp.zeros((d_pad,), jnp.float32)
        return jnp.pad(bvec.astype(jnp.float32) * scale, (0, d_pad - d_out))

    # 1/sqrt(d_out) folded into Wq / bq here (pad_w materializes a copy anyway,
    # so the scaling is free and removes a per-tile VPU multiply in the kernel).
    w_qkv = jnp.concatenate(
        [pad_w(w_query, q_scale), pad_w(w_key), pad_w(w_value)], axis=1)
    bias = jnp.concatenate(
        [pad_b(b_query, q_scale), pad_b(b_key), pad_b(b_value)])[None, :]

    # ---- Kernel 1: fused QKV projection ---------------------------------- #
    # Sequence tile 256-512 rows: fills the 256-wide MXU and amortizes the
    # ~0.35 us per-grid-step overhead, independent of the attention block_q.
    proj_m = block_q
    for cand in (512, 384, 256):
        if cand > proj_m and s_pad % cand == 0:
            proj_m = cand
            break
    n_proj = s_pad // proj_m

    # TODO(synk): for large d_in (>~2K) the fused (d_in, 3*d_pad) weight should be
    # tiled over a reduction grid axis and single-buffered (pl.Buffered(1)) so it
    # fits v7x's 64 MiB VMEM; at these shapes the whole weight is VMEM-resident.
    qkv_shapes = tuple(jax.ShapeDtypeStruct((B, s_pad, d_pad), compute_dtype)
                       for _ in range(3))
    qkv_out_spec = pl.BlockSpec((1, proj_m, d_pad), lambda b, i: (b, i, 0))
    q, k, v = pl.pallas_call(
        functools.partial(_qkv_proj_kernel, d_pad=d_pad),
        out_shape=qkv_shapes,
        grid_spec=pltpu.PrefetchScalarGridSpec(
            num_scalar_prefetch=0,
            grid=(B, n_proj),
            in_specs=[
                pl.BlockSpec((1, proj_m, d_in), lambda b, i: (b, i, 0)),
                pl.BlockSpec((d_in, 3 * d_pad), lambda b, i: (0, 0)),
                pl.BlockSpec((1, 3 * d_pad), lambda b, i: (0, 0)),
            ],
            out_specs=[qkv_out_spec, qkv_out_spec, qkv_out_spec],
        ),
        compiler_params=pltpu.CompilerParams(
            dimension_semantics=("parallel", "parallel")),
    )(x_p, w_qkv, bias)

    # ---- Kernel 2: flash-style causal attention --------------------------- #
    n_q = s_pad // block_q
    n_k = s_pad // block_k

    def q_map(b, qi, ki):
        return (b, qi, 0)

    def kv_map(b, qi, ki):
        # Clamp fully-future kv tiles to the last tile this q row-block needs;
        # the block index then repeats across the skipped steps, so Pallas skips
        # their K/V DMA entirely.  The pl.when guard in the kernel keeps the
        # re-presented block from being accumulated twice.
        last = (qi * block_q + (block_q - 1)) // block_k
        return (b, jnp.minimum(ki, last), 0)

    itemsize = jnp.dtype(compute_dtype).itemsize
    cost = pl.CostEstimate(
        flops=int(2 * B * s_pad * s_pad * d_pad),        # QK^T + PV, causal-halved
        transcendentals=int(B * s_pad * s_pad // 2),      # exp on the lower triangle
        bytes_accessed=int(B * s_pad * d_pad * itemsize * (2 + (n_q + 1))),
    )

    out_p = pl.pallas_call(
        functools.partial(_flash_causal_kernel, block_q=block_q, block_k=block_k,
                          dropout_p=float(dropout_p),
                          dropout_seed=int(dropout_seed)),
        out_shape=jax.ShapeDtypeStruct((B, s_pad, d_pad), out_dtype),
        grid_spec=pltpu.PrefetchScalarGridSpec(
            num_scalar_prefetch=0,
            grid=(B, n_q, n_k),
            in_specs=[
                pl.BlockSpec((1, block_q, d_pad), q_map),
                pl.BlockSpec((1, block_k, d_pad), kv_map),
                pl.BlockSpec((1, block_k, d_pad), kv_map),
            ],
            out_specs=pl.BlockSpec((1, block_q, d_pad), q_map),
            scratch_shapes=[
                pltpu.VMEM((block_q, 1), jnp.float32),       # running max  m
                pltpu.VMEM((block_q, 1), jnp.float32),       # running sum  l
                pltpu.VMEM((block_q, d_pad), jnp.float32),   # context acc
            ],
        ),
        compiler_params=pltpu.CompilerParams(
            dimension_semantics=("parallel", "parallel", "arbitrary"),
            vmem_limit_bytes=48 << 20),   # fits these tiles with 2-deep buffers on v7x too
        cost_estimate=cost,
    )(q, k, v)

    return out_p[:, :S, :d_out]


# --------------------------------------------------------------------------- #
# Pure-JAX reference (eval mode, i.e. dropout disabled)
# --------------------------------------------------------------------------- #
def _reference(x, wq, wk, wv, bq=None, bk=None, bv=None):
    q = x @ wq + (bq if bq is not None else 0.0)
    k = x @ wk + (bk if bk is not None else 0.0)
    v = x @ wv + (bv if bv is not None else 0.0)
    S = x.shape[1]
    d_out = wq.shape[1]
    scores = jnp.einsum('bqd,bkd->bqk', q, k)
    mask = jnp.triu(jnp.ones((S, S), dtype=bool), k=1)     # True above diagonal
    scores = jnp.where(mask[None], -jnp.inf, scores)
    weights = jax.nn.softmax(scores / jnp.sqrt(jnp.float32(d_out)), axis=-1)
    return jnp.einsum('bqk,bkd->bqd', weights, v)


if __name__ == "__main__":
    key = jax.random.PRNGKey(0)
    kx, kq, kk, kv, kbq, kbk, kbv = jax.random.split(key, 7)

    batch, seq_len, d_in, d_out = 2, 8, 32, 16   # context_length == seq_len here
    init = 1.0 / (d_in ** 0.5)                   # ~nn.Linear init range

    x = jax.random.normal(kx, (batch, seq_len, d_in), dtype=jnp.float32)
    w_query = jax.random.uniform(kq, (d_in, d_out), minval=-init, maxval=init)
    w_key = jax.random.uniform(kk, (d_in, d_out), minval=-init, maxval=init)
    w_value = jax.random.uniform(kv, (d_in, d_out), minval=-init, maxval=init)

    # 1) qkv_bias=False, dropout disabled (eval mode) -- compare vs reference.
    out = jax.block_until_ready(
        causal_attention(x, w_query, w_key, w_value, dropout_p=0.0))
    ref = _reference(x, w_query, w_key, w_value)
    assert out.shape == (batch, seq_len, d_out)
    assert jnp.allclose(out, ref, atol=1e-3, rtol=1e-3), "mismatch (no bias)"

    # 2) qkv_bias=True path.
    b_q = jax.random.uniform(kbq, (d_out,), minval=-init, maxval=init)
    b_k = jax.random.uniform(kbk, (d_out,), minval=-init, maxval=init)
    b_v = jax.random.uniform(kbv, (d_out,), minval=-init, maxval=init)
    out_b = jax.block_until_ready(
        causal_attention(x, w_query, w_key, w_value, b_q, b_k, b_v, dropout_p=0.0))
    ref_b = _reference(x, w_query, w_key, w_value, b_q, b_k, b_v)
    assert jnp.allclose(out_b, ref_b, atol=1e-3, rtol=1e-3), "mismatch (bias)"

    # 3) bf16 compute path (full-rate MXU) -- looser tolerance vs f32 reference.
    out_bf = jax.block_until_ready(
        causal_attention(x, w_query, w_key, w_value, dropout_p=0.0,
                         compute_dtype=jnp.bfloat16))
    assert jnp.allclose(out_bf, ref, atol=5e-2, rtol=5e-2), "mismatch (bf16)"

    # 4) Dropout (training mode) smoke test: stochastic, so only sanity-check it.
    out_d = jax.block_until_ready(
        causal_attention(x, w_query, w_key, w_value, dropout_p=0.1, dropout_seed=42))
    assert out_d.shape == (batch, seq_len, d_out)
    assert bool(jnp.all(jnp.isfinite(out_d)))

    print("KERNEL_OK")
</pallas_src>

<mosaic_0001>
module attributes {stable_mosaic.version = 11 : i64} {
  func.func @_qkv_proj_kernel(%arg0: i32, %arg1: i32, %arg2: memref<1x128x32xf32, #tpu.memory_space<vmem>>, %arg3: memref<32x384xf32, #tpu.memory_space<vmem>>, %arg4: memref<1x384xf32, #tpu.memory_space<vmem>>, %arg5: memref<1x128x128xf32, #tpu.memory_space<vmem>>, %arg6: memref<1x128x128xf32, #tpu.memory_space<vmem>>, %arg7: memref<1x128x128xf32, #tpu.memory_space<vmem>>) attributes {dimension_semantics = [#tpu.dimension_semantics<parallel>, #tpu.dimension_semantics<parallel>], iteration_bounds = array<i64: 2, 1>, scalar_prefetch = 0 : i64, scratch_operands = 0 : i64, tpu.core_type = #tpu.core_type<tc>, window_params = [{transform_indices = @transform_0, window_bounds = array<i64: 1, 128, 32>}, {pipeline_mode = #tpu.pipeline_mode<synchronous>, transform_indices = @transform_1, window_bounds = array<i64: 32, 384>}, {pipeline_mode = #tpu.pipeline_mode<synchronous>, transform_indices = @transform_2, window_bounds = array<i64: 1, 384>}, {transform_indices = @transform_3, window_bounds = array<i64: 1, 128, 128>}, {transform_indices = @transform_4, window_bounds = array<i64: 1, 128, 128>}, {transform_indices = @transform_5, window_bounds = array<i64: 1, 128, 128>}]} {
    %c0 = arith.constant 0 : index
    %c0_0 = arith.constant 0 : index
    %c0_1 = arith.constant 0 : index
    %0 = vector.load %arg2[%c0, %c0_0, %c0_1] : memref<1x128x32xf32, #tpu.memory_space<vmem>>, vector<1x128x32xf32>
    %1 = vector.shape_cast %0 : vector<1x128x32xf32> to vector<128x32xf32>
    %c0_2 = arith.constant 0 : index
    %c0_3 = arith.constant 0 : index
    %2 = vector.load %arg3[%c0_2, %c0_3] : memref<32x384xf32, #tpu.memory_space<vmem>>, vector<32x384xf32>
    %cst = arith.constant dense<0.000000e+00> : vector<128x384xf32>
    %3 = tpu.matmul %1, %2, %cst {dimension_numbers = #tpu.dot_dimension_numbers<[1], [0], [0], [1], [0, 0, 1, 1], [], []>} : vector<128x32xf32>, vector<32x384xf32>, vector<128x384xf32> -> vector<128x384xf32>
    %c0_4 = arith.constant 0 : index
    %c0_5 = arith.constant 0 : index
    %4 = vector.load %arg4[%c0_4, %c0_5] : memref<1x384xf32, #tpu.memory_space<vmem>>, vector<1x384xf32>
    %5 = vector.broadcast %4 : vector<1x384xf32> to vector<128x384xf32>
    %6 = arith.addf %3, %5 : vector<128x384xf32>
    %7 = vector.extract_strided_slice %6 {offsets = [0, 0], sizes = [128, 128], strides = [1, 1]} : vector<128x384xf32> to vector<128x128xf32>
    %c0_6 = arith.constant 0 : index
    %c0_7 = arith.constant 0 : index
    %c0_8 = arith.constant 0 : index
    %8 = vector.load %arg5[%c0_6, %c0_7, %c0_8] : memref<1x128x128xf32, #tpu.memory_space<vmem>>, vector<1x128x128xf32>
    %9 = vector.shape_cast %8 : vector<1x128x128xf32> to vector<128x128xf32>
    %10 = vector.shape_cast %7 : vector<128x128xf32> to vector<1x128x128xf32>
    tpu.vector_store %arg5[%c0_6, %c0_7, %c0_8], %10 {strides = array<i32>} : memref<1x128x128xf32, #tpu.memory_space<vmem>>, vector<1x128x128xf32>,
    %11 = vector.extract_strided_slice %6 {offsets = [0, 128], sizes = [128, 128], strides = [1, 1]} : vector<128x384xf32> to vector<128x128xf32>
    %c0_9 = arith.constant 0 : index
    %c0_10 = arith.constant 0 : index
    %c0_11 = arith.constant 0 : index
    %12 = vector.load %arg6[%c0_9, %c0_10, %c0_11] : memref<1x128x128xf32, #tpu.memory_space<vmem>>, vector<1x128x128xf32>
    %13 = vector.shape_cast %12 : vector<1x128x128xf32> to vector<128x128xf32>
    %14 = vector.shape_cast %11 : vector<128x128xf32> to vector<1x128x128xf32>
    tpu.vector_store %arg6[%c0_9, %c0_10, %c0_11], %14 {strides = array<i32>} : memref<1x128x128xf32, #tpu.memory_space<vmem>>, vector<1x128x128xf32>,
    %15 = vector.extract_strided_slice %6 {offsets = [0, 256], sizes = [128, 128], strides = [1, 1]} : vector<128x384xf32> to vector<128x128xf32>
    %c0_12 = arith.constant 0 : index
    %c0_13 = arith.constant 0 : index
    %c0_14 = arith.constant 0 : index
    %16 = vector.load %arg7[%c0_12, %c0_13, %c0_14] : memref<1x128x128xf32, #tpu.memory_space<vmem>>, vector<1x128x128xf32>
    %17 = vector.shape_cast %16 : vector<1x128x128xf32> to vector<128x128xf32>
    %18 = vector.shape_cast %15 : vector<128x128xf32> to vector<1x128x128xf32>
    tpu.vector_store %arg7[%c0_12, %c0_13, %c0_14], %18 {strides = array<i32>} : memref<1x128x128xf32, #tpu.memory_space<vmem>>, vector<1x128x128xf32>,
    return
  }
  func.func @transform_0(%arg0: i32, %arg1: i32) -> (i32, i32, i32) {
    %c0_i32 = arith.constant 0 : i32
    %c0_i32_0 = arith.constant 0 : i32
    return %arg0, %arg1, %c0_i32 : i32, i32, i32
  }
  func.func @transform_1(%arg0: i32, %arg1: i32) -> (i32, i32) {
    %c0_i32 = arith.constant 0 : i32
    %c0_i32_0 = arith.constant 0 : i32
    %c0_i32_1 = arith.constant 0 : i32
    return %c0_i32, %c0_i32_0 : i32, i32
  }
  func.func @transform_2(%arg0: i32, %arg1: i32) -> (i32, i32) {
    %c0_i32 = arith.constant 0 : i32
    %c0_i32_0 = arith.constant 0 : i32
    %c0_i32_1 = arith.constant 0 : i32
    return %c0_i32, %c0_i32_0 : i32, i32
  }
  func.func @transform_3(%arg0: i32, %arg1: i32) -> (i32, i32, i32) {
    %c0_i32 = arith.constant 0 : i32
    %c0_i32_0 = arith.constant 0 : i32
    return %arg0, %arg1, %c0_i32 : i32, i32, i32
  }
  func.func @transform_4(%arg0: i32, %arg1: i32) -> (i32, i32, i32) {
    %c0_i32 = arith.constant 0 : i32
    %c0_i32_0 = arith.constant 0 : i32
    return %arg0, %arg1, %c0_i32 : i32, i32, i32
  }
  func.func @transform_5(%arg0: i32, %arg1: i32) -> (i32, i32, i32) {
    %c0_i32 = arith.constant 0 : i32
    %c0_i32_0 = arith.constant 0 : i32
    return %arg0, %arg1, %c0_i32 : i32, i32, i32
  }
}

</mosaic_0001>

<llo_original>
// kernel: tpu_custom_call.1
$region0: #{tpu_custom_call.1}
  #allocation0 [shape = 'u32[]', space=smem, size = 0x4, offset = 0x4, fixed_abs, tag = 'smem constant byte address 0x4 - core index']
  #allocation1 [shape = 'u32[72,128]{1,0:T(1,128)}', space=vmem, size = 0x9000, scoped, tag = 'internal scratch']
  %s0 = inlined_call_operand.vmem [shape: f32[2,128,32], index: 0, kind: input, shape index: {}]
  %s1 = inlined_call_operand.vmem [shape: f32[32,384], index: 1, kind: input, shape index: {}]
  %s2 = inlined_call_operand.vmem [shape: f32[1,384], index: 2, kind: input, shape index: {}]
  %s3 = inlined_call_operand.hbm [shape: f32[2,128,128], index: 3, kind: output, shape index: {0}]
  %s4 = inlined_call_operand.hbm [shape: f32[2,128,128], index: 4, kind: output, shape index: {1}]
  %s5 = inlined_call_operand.hbm [shape: f32[2,128,128], index: 5, kind: output, shape index: {2}]
  %6 = xla_tuple %s3, %s4, %s5
  %s7 = sld [smem:[#allocation0]]
  $region61: #{tpu_custom_call.1} parent=0
    _
  %s9 = ssub.s32 1, %s7
  %s10 = scalar_select 0, %s9, %s7
  $region1: #{tpu_custom_call.1} parent=0
    #allocation2 [shape = 'u8[131072]{0}', space=vmem, size = 0x20000, scoped, tag = 'output window, operand 0']
    #allocation3 [shape = 's32[2]{0}', space=sflag, size = 0x8, scoped, tag = 'scoped memory for tpu_custom_call.1']
    #allocation4 [shape = 'u8[131072]{0}', space=vmem, size = 0x20000, scoped, tag = 'output window, operand 1']
    #allocation5 [shape = 's32[2]{0}', space=sflag, size = 0x8, scoped, tag = 'scoped memory for tpu_custom_call.1']
    #allocation6 [shape = 'u8[131072]{0}', space=vmem, size = 0x20000, scoped, tag = 'output window, operand 2']
    %11 = vsyncpa [#allocation3], 0
    %s12 = scalar_lea.sflag [#allocation3], 1
    %13 = vsyncpa %s12, 0
    %14 = vsyncpa [#allocation5], 0
    %s15 = scalar_lea.sflag [#allocation5], 1
    %16 = vsyncpa %s15, 0
    loop: start=0, step=1, limit=4
    $region2: #{tpu_custom_call.1} parent=1 // loop_pre_header
      _
    $region3: #{tpu_custom_call.1} parent=1 // loop_header
      %s18 = sphi 0, %s22
      %p19 = scmp.ge.s32.totalorder %s18, 4
      %s25 = sphi 0, %s37
      %s26 = sphi 0, %s33
      %s27 = sphi 0, %s25
      %s28 = sphi 0, %s26
      %s29 = sphi 0, %s27
      %s30 = sphi 0, %s28
      %s42 = sphi 0, %s44
      %s45 = sphi 0, %s42
      %s46 = sphi 0, %s45
      %s62 = sphi 0, %s46
      %s66 = sphi 0, %s66
      %s68 = sphi 0, %s66
      %s69 = sphi 0, %s68
      %s83 = sphi 0, %s69
      %s87 = sphi 0, %s87
      %s89 = sphi 0, %s87
      %s90 = sphi 0, %s89
      %s104 = sphi 0, %s90
      %s112 = sphi 0, %s114
      %s115 = sphi 0, %s112
      %s116 = sphi 0, %s115
      %s132 = sphi 0, %s116
      %s140 = sphi 0, %s142
      %s143 = sphi 0, %s140
      %s144 = sphi 0, %s143
      %s160 = sphi 0, %s144
      %s168 = sphi 0, %s170
      %s171 = sphi 0, %s168
      %s172 = sphi 0, %s171
      %s188 = sphi 0, %s172
    $region4: #{tpu_custom_call.1} parent=1 // loop_header_branch
      %21 = sbr.rel (%p19) target = $region8
    $region5: #{tpu_custom_call.1} parent=1 // loop_body
      %s23 = ssub.s32 %s18, 1
      %s24 = ssub.s32 %s18, 2
      %s31 = sadd.s32 1, %s26
      %p32 = scmp.ge.s32.totalorder %s31, 1
      %s33 = scalar_select %p32, 0, %s31
      %s34 = sadd.s32 1, %s25
      %s35 = scalar_select %p32, %s34, %s25
      %p36 = scmp.ge.s32.totalorder %s35, 2
      %s37 = scalar_select %p36, 0, %s35
      %s38 = ssub.s32 %s25, %s37
      %s39 = ssub.s32 %s26, %s33
      %s40 = sor.u32 %s38, %s39
      %p41 = scmp.eq.s32.totalorder %s40, 0
      %s43 = sadd.s32 %s42, 1
      %s44 = scalar_select %p41, %s42, %s43
      %p47 = pneg %p41
      %p48 = scmp.eq.s32.totalorder %s18, 1
      %p49 = por %p47, %p48
      %p50 = scmp.ne.s32.totalorder %s42, %s45
      %p51 = scmp.eq.s32.totalorder %s18, 0
      %p52 = por %p50, %p51
      %p53 = scmp.ne.s32.totalorder %s42, %s45
      %p54 = scmp.eq.s32.totalorder %s23, 1
      %p55 = por %p53, %p54
      %p56 = scmp.ne.s32.totalorder %s45, %s46
      %p57 = scmp.eq.s32.totalorder %s23, 0
      %p58 = por %p56, %p57
      %p59 = scmp.ne.s32.totalorder %s45, %s46
      %p60 = scmp.eq.s32.totalorder %s24, 1
      %p61 = por %p59, %p60
      %p63 = scmp.ne.s32.totalorder %s46, %s62
      %p64 = scmp.eq.s32.totalorder %s24, 0
      %p65 = por %p63, %p64
      %s67 = sadd.s32 %s66, 1
      %p70 = scmp.eq.s32.totalorder %s18, 1
      %p71 = scmp.ne.s32.totalorder %s66, %s68
      %p72 = scmp.eq.s32.totalorder %s18, 0
      %p73 = por %p71, %p72
      %p74 = scmp.ne.s32.totalorder %s66, %s68
      %p75 = scmp.eq.s32.totalorder %s23, 1
      %p76 = por %p74, %p75
      %p77 = scmp.ne.s32.totalorder %s68, %s69
      %p78 = scmp.eq.s32.totalorder %s23, 0
      %p79 = por %p77, %p78
      %p80 = scmp.ne.s32.totalorder %s68, %s69
      %p81 = scmp.eq.s32.totalorder %s24, 1
      %p82 = por %p80, %p81
      %p84 = scmp.ne.s32.totalorder %s69, %s83
      %p85 = scmp.eq.s32.totalorder %s24, 0
      %p86 = por %p84, %p85
      %s88 = sadd.s32 %s87, 1
      %p91 = scmp.eq.s32.totalorder %s18, 1
      %p92 = scmp.ne.s32.totalorder %s87, %s89
      %p93 = scmp.eq.s32.totalorder %s18, 0
      %p94 = por %p92, %p93
      %p95 = scmp.ne.s32.totalorder %s87, %s89
      %p96 = scmp.eq.s32.totalorder %s23, 1
      %p97 = por %p95, %p96
      %p98 = scmp.ne.s32.totalorder %s89, %s90
      %p99 = scmp.eq.s32.totalorder %s23, 0
      %p100 = por %p98, %p99
      %p101 = scmp.ne.s32.totalorder %s89, %s90
      %p102 = scmp.eq.s32.totalorder %s24, 1
      %p103 = por %p101, %p102
      %p105 = scmp.ne.s32.totalorder %s90, %s104
      %p106 = scmp.eq.s32.totalorder %s24, 0
      %p107 = por %p105, %p106
      %s108 = ssub.s32 %s25, %s37
      %s109 = ssub.s32 %s26, %s33
      %s110 = sor.u32 %s108, %s109
      %p111 = scmp.eq.s32.totalorder %s110, 0
      %s113 = sadd.s32 %s112, 1
      %s114 = scalar_select %p111, %s112, %s113
      %p117 = pneg %p111
      %p118 = scmp.eq.s32.totalorder %s18, 1
      %p119 = por %p117, %p118
      %p120 = scmp.ne.s32.totalorder %s112, %s115
      %p121 = scmp.eq.s32.totalorder %s18, 0
      %p122 = por %p120, %p121
      %p123 = scmp.ne.s32.totalorder %s112, %s115
      %p124 = scmp.eq.s32.totalorder %s23, 1
      %p125 = por %p123, %p124
      %p126 = scmp.ne.s32.totalorder %s115, %s116
      %p127 = scmp.eq.s32.totalorder %s23, 0
      %p128 = por %p126, %p127
      %p129 = scmp.ne.s32.totalorder %s115, %s116
      %p130 = scmp.eq.s32.totalorder %s24, 1
      %p131 = por %p129, %p130
      %p133 = scmp.ne.s32.totalorder %s116, %s132
      %p134 = scmp.eq.s32.totalorder %s24, 0
      %p135 = por %p133, %p134
      %s136 = ssub.s32 %s25, %s37
      %s137 = ssub.s32 %s26, %s33
      %s138 = sor.u32 %s136, %s137
      %p139 = scmp.eq.s32.totalorder %s138, 0
      %s141 = sadd.s32 %s140, 1
      %s142 = scalar_select %p139, %s140, %s141
      %p145 = pneg %p139
      %p146 = scmp.eq.s32.totalorder %s18, 1
      %p147 = por %p145, %p146
      %p148 = scmp.ne.s32.totalorder %s140, %s143
      %p149 = scmp.eq.s32.totalorder %s18, 0
      %p150 = por %p148, %p149
      %p151 = scmp.ne.s32.totalorder %s140, %s143
      %p152 = scmp.eq.s32.totalorder %s23, 1
      %p153 = por %p151, %p152
      %p154 = scmp.ne.s32.totalorder %s143, %s144
      %p155 = scmp.eq.s32.totalorder %s23, 0
      %p156 = por %p154, %p155
      %p157 = scmp.ne.s32.totalorder %s143, %s144
      %p158 = scmp.eq.s32.totalorder %s24, 1
      %p159 = por %p157, %p158
      %p161 = scmp.ne.s32.totalorder %s144, %s160
      %p162 = scmp.eq.s32.totalorder %s24, 0
      %p163 = por %p161, %p162
      %s164 = ssub.s32 %s25, %s37
      %s165 = ssub.s32 %s26, %s33
      %s166 = sor.u32 %s164, %s165
      %p167 = scmp.eq.s32.totalorder %s166, 0
      %s169 = sadd.s32 %s168, 1
      %s170 = scalar_select %p167, %s168, %s169
      %p173 = pneg %p167
      %p174 = scmp.eq.s32.totalorder %s18, 1
      %p175 = por %p173, %p174
      %p176 = scmp.ne.s32.totalorder %s168, %s171
      %p177 = scmp.eq.s32.totalorder %s18, 0
      %p178 = por %p176, %p177
      %p179 = scmp.ne.s32.totalorder %s168, %s171
      %p180 = scmp.eq.s32.totalorder %s23, 1
      %p181 = por %p179, %p180
      %p182 = scmp.ne.s32.totalorder %s171, %s172
      %p183 = scmp.eq.s32.totalorder %s23, 0
      %p184 = por %p182, %p183
      %p185 = scmp.ne.s32.totalorder %s171, %s172
      %p186 = scmp.eq.s32.totalorder %s24, 1
      %p187 = por %p185, %p186
      %p189 = scmp.ne.s32.totalorder %s172, %s188
      %p190 = scmp.eq.s32.totalorder %s24, 0
      %p191 = por %p189, %p190
      %p192 = scmp.le.s32.totalorder 1, %s18
      %p193 = scmp.lt.s32.totalorder %s18, 3
      %p194 = pnand %p192, %p193
      %p195 = pneg %p194
      // Predicated region
      $region9: #{tpu_custom_call.1} parent=5 // pred_check
        _
      $region10: #{tpu_custom_call.1} parent=5 // pred_check_branch
        %197 = sbr.rel (%p194) target = $region12
      $region11: #{tpu_custom_call.1} parent=5 // pred_region
        %s198 = ssub.s32 %s18, 1
        // Predicated region
        $region13: #{tpu_custom_call.1} parent=11 // pred_check
          %p199 = pneg %p79
        $region14: #{tpu_custom_call.1} parent=11 // pred_check_branch
          %201 = sbr.rel (%p199) target = $region16
        $region15: #{tpu_custom_call.1} parent=11 // pred_region
          _
        $region16: #{tpu_custom_call.1} parent=11 // pred_fallthru
          _
        // Predicated region
        $region17: #{tpu_custom_call.1} parent=11 // pred_check
          %p202 = pneg %p100
        $region18: #{tpu_custom_call.1} parent=11 // pred_check_branch
          %204 = sbr.rel (%p202) target = $region20
        $region19: #{tpu_custom_call.1} parent=11 // pred_region
          _
        $region20: #{tpu_custom_call.1} parent=11 // pred_fallthru
          _
      $region12: #{tpu_custom_call.1} parent=5 // pred_fallthru
        _
      %p205 = scmp.lt.s32.totalorder %s18, 2
      // Predicated region
      $region21: #{tpu_custom_call.1} parent=5 // pred_check
        %p206 = pneg %p205
      $region22: #{tpu_custom_call.1} parent=5 // pred_check_branch
        %208 = sbr.rel (%p206) target = $region24
      $region23: #{tpu_custom_call.1} parent=5 // pred_region
        // Predicated region
        $region25: #{tpu_custom_call.1} parent=23 // pred_check
          %p209 = pneg %p52
        $region26: #{tpu_custom_call.1} parent=23 // pred_check_branch
          %211 = sbr.rel (%p209) target = $region28
        $region27: #{tpu_custom_call.1} parent=23 // pred_region
          %s212 = smul.u32 16, %s26
          %p213 = scmp.lt.s32.totalorder %s25, 1
          %s214 = scalar_select %p213, %s25, 1
          %p215 = scmp.lt.s32.totalorder %s212, 15
          %s216 = scalar_select %p215, %s212, 15
          %s217 = smul.addr %s214, 16
          %s218 = sadd.s32 %s216, %s217
          %s219 = smul.addr %s218, 8
          %s220 = scalar_lea.vmem %s0, %s219
          %s221 = smul.u32 16, %s26
        $region28: #{tpu_custom_call.1} parent=23 // pred_fallthru
          _
      $region24: #{tpu_custom_call.1} parent=5 // pred_fallthru
        _
      %p222 = scmp.le.s32.totalorder 1, %s18
      %p223 = scmp.lt.s32.totalorder %s18, 3
      %p224 = pnand %p222, %p223
      %p225 = pneg %p224
      // Predicated region
      $region29: #{tpu_custom_call.1} parent=5 // pred_check
        _
      $region30: #{tpu_custom_call.1} parent=5 // pred_check_branch
        %227 = sbr.rel (%p224) target = $region32
      $region31: #{tpu_custom_call.1} parent=5 // pred_region
        %s228 = ssub.s32 %s18, 1
        %s229 = smul.u32 16, %s28
        %p230 = scmp.lt.s32.totalorder %s27, 1
        %s231 = scalar_select %p230, %s27, 1
        %p232 = scmp.lt.s32.totalorder %s229, 15
        %s233 = scalar_select %p232, %s229, 15
        %s234 = smul.addr %s231, 16
        %s235 = sadd.s32 %s233, %s234
        %s236 = smul.addr %s235, 8
        %s237 = scalar_lea.vmem %s0, %s236
        %p238 = pneg %p58
        %p239 = pneg %p55
        %p240 = pneg %p79
        %p241 = pneg %p76
        %p242 = pneg %p100
        %p243 = pneg %p97
        %p244 = pneg %p128
        %p245 = pneg %p125
        %s246 = sand.u32 %s115, 1
        %s247 = scalar_lea.sflag [#allocation3], %s246
        %s248 = sand.u32 %s115, 1
        %s249 = smul.addr %s248, 128
        %s250 = scalar_lea.vmem [#allocation2], %s249
        %p251 = pneg %p156
        %p252 = pneg %p153
        %s253 = sand.u32 %s23, 1
        %s254 = scalar_lea.sflag [#allocation5], %s253
        %s255 = sand.u32 %s143, 1
        %s256 = smul.addr %s255, 128
        %s257 = scalar_lea.vmem [#allocation4], %s256
        %p258 = pneg %p184
        %p259 = pneg %p181
        %s260 = sand.u32 %s23, 1
        %s261 = scalar_lea.sflag [#allocation5], %s260
        %s262 = sand.u32 %s171, 1
        %s263 = smul.addr %s262, 128
        %s264 = scalar_lea.vmem [#allocation6], %s263
        %s265 = smul.u32 16, %s28
        %p266 = scmp.lt.s32.totalorder %s27, 1
        %s267 = scalar_select %p266, %s27, 1
        %p268 = scmp.lt.s32.totalorder %s265, 15
        %s269 = scalar_select %p268, %s265, 15
        %s270 = smul.addr %s267, 16
        %s271 = sadd.s32 %s269, %s270
        %s272 = smul.addr %s271, 8
        %s273 = scalar_lea.vmem %s0, %s272
        %s274 = smul.u32 16, %s28
        %s275 = smul.u32 16, %s28
        %s276 = smul.u32 16, %s28
        %s277 = smul.u32 16, %s28
        %v278 = vld [vmem:[%s273] sm:$0xff]
        %v279 = vld [vmem:[%s273 + $0x8] sm:$0xff]
        %v280 = vld [vmem:[%s273 + $0x10] sm:$0xff]
        %v281 = vld [vmem:[%s273 + $0x18] sm:$0xff]
        %v282 = vld [vmem:[%s273 + $0x20] sm:$0xff]
        %v283 = vld [vmem:[%s273 + $0x28] sm:$0xff]
        %v284 = vld [vmem:[%s273 + $0x30] sm:$0xff]
        %v285 = vld [vmem:[%s273 + $0x38] sm:$0xff]
        %v286 = vld [vmem:[%s273 + $0x40] sm:$0xff]
        %v287 = vld [vmem:[%s273 + $0x48] sm:$0xff]
        %v288 = vld [vmem:[%s273 + $0x50] sm:$0xff]
        %v289 = vld [vmem:[%s273 + $0x58] sm:$0xff]
        %v290 = vld [vmem:[%s273 + $0x60] sm:$0xff]
        %v291 = vld [vmem:[%s273 + $0x68] sm:$0xff]
        %v292 = vld [vmem:[%s273 + $0x70] sm:$0xff]
        %v293 = vld [vmem:[%s273 + $0x78] sm:$0xff]
        %v294 = vld [vmem:[%s1] sm:$0xff]
        %v295 = vld [vmem:[%s1 + $0x8] sm:$0xff]
        %v296 = vld [vmem:[%s1 + $0x10] sm:$0xff]
        %v297 = vld [vmem:[%s1 + $0x18] sm:$0xff]
        %v298 = vld [vmem:[%s1 + $0x20] sm:$0xff]
        %v299 = vld [vmem:[%s1 + $0x28] sm:$0xff]
        %v300 = vld [vmem:[%s1 + $0x30] sm:$0xff]
        %v301 = vld [vmem:[%s1 + $0x38] sm:$0xff]
        %v302 = vld [vmem:[%s1 + $0x40] sm:$0xff]
        %v303 = vld [vmem:[%s1 + $0x48] sm:$0xff]
        %v304 = vld [vmem:[%s1 + $0x50] sm:$0xff]
        %v305 = vld [vmem:[%s1 + $0x58] sm:$0xff]
        %v306 = vld [vmem:[%s2] sm:$0x7]
        %v308 = vperm.slane %v306, 0
        %v309 = vperm.slane %v306, 1
        %v310 = vperm.slane %v306, 2
        %vm314 = vcmask 261120
        %v316 = vsel %vm314, %v278, 0
        %v319 = vsel %vm314, %v279, 0
        %v322 = vsel %vm314, %v280, 0
        %v325 = vsel %vm314, %v281, 0
        %v328 = vsel %vm314, %v282, 0
        %v331 = vsel %vm314, %v283, 0
        %v334 = vsel %vm314, %v284, 0
        %v337 = vsel %vm314, %v285, 0
        %v340 = vsel %vm314, %v286, 0
        %v343 = vsel %vm314, %v287, 0
        %v346 = vsel %vm314, %v288, 0
        %v349 = vsel %vm314, %v289, 0
        %v352 = vsel %vm314, %v290, 0
        %v355 = vsel %vm314, %v291, 0
        %v358 = vsel %vm314, %v292, 0
        %v361 = vsel %vm314, %v293, 0
        %363 = vmatpush.msra.mxu0 0.0
        %364 = vmatpush.msra.mxu0 0.0
        %365 = vmatpush.msra.mxu0 0.0
        %366 = vmatpush.msra.mxu0 0.0
        %367 = vmatpush.msra.mxu0 0.0
        %368 = vmatpush.msra.mxu0 0.0
        %369 = vmatpush.msra.mxu0 0.0
        %370 = vmatpush.msra.mxu0 0.0
        %371 = vmatpush.msra.mxu0 0.0
        %372 = vmatpush.msra.mxu0 0.0
        %373 = vmatpush.msra.mxu0 0.0
        %374 = vmatpush.msra.mxu0 0.0
        %375 = vmatpush.msra.mxu0 %v303
        %376 = vmatpush.msra.mxu0 %v300
        %377 = vmatpush.msra.mxu0 %v297
        %378 = vmatpush.msra.mxu0 %v294
        %379 = vmatmul.f32.gmra.mxu0 %v316
        %v380 = vpop.f32.mrf.mxu0
        %v381 = vadd.f32 %v308, %v380
        %382 = vmatmul.f32.gmra.mxu0 %v319
        %v383 = vpop.f32.mrf.mxu0
        %v384 = vadd.f32 %v308, %v383
        %385 = vmatmul.f32.gmra.mxu0 %v322
        %v386 = vpop.f32.mrf.mxu0
        %v387 = vadd.f32 %v308, %v386
        %388 = vmatmul.f32.gmra.mxu0 %v325
        %v389 = vpop.f32.mrf.mxu0
        %v390 = vadd.f32 %v308, %v389
        %391 = vmatmul.f32.gmra.mxu0 %v328
        %v392 = vpop.f32.mrf.mxu0
        %v393 = vadd.f32 %v308, %v392
        %394 = vmatmul.f32.gmra.mxu0 %v331
        %v395 = vpop.f32.mrf.mxu0
        %v396 = vadd.f32 %v308, %v395
        %397 = vmatmul.f32.gmra.mxu0 %v334
        %v398 = vpop.f32.mrf.mxu0
        %v399 = vadd.f32 %v308, %v398
        %400 = vmatmul.f32.gmra.mxu0 %v337
        %v401 = vpop.f32.mrf.mxu0
        %v402 = vadd.f32 %v308, %v401
        %403 = vmatmul.f32.gmra.mxu0 %v340
        %v404 = vpop.f32.mrf.mxu0
        %v405 = vadd.f32 %v308, %v404
        %406 = vmatmul.f32.gmra.mxu0 %v343
        %v407 = vpop.f32.mrf.mxu0
        %v408 = vadd.f32 %v308, %v407
        %409 = vmatmul.f32.gmra.mxu0 %v346
        %v410 = vpop.f32.mrf.mxu0
        %v411 = vadd.f32 %v308, %v410
        %412 = vmatmul.f32.gmra.mxu0 %v349
        %v413 = vpop.f32.mrf.mxu0
        %v414 = vadd.f32 %v308, %v413
        %415 = vmatmul.f32.gmra.mxu0 %v352
        %v416 = vpop.f32.mrf.mxu0
        %v417 = vadd.f32 %v308, %v416
        %418 = vmatmul.f32.gmra.mxu0 %v355
        %v419 = vpop.f32.mrf.mxu0
        %v420 = vadd.f32 %v308, %v419
        %421 = vmatmul.f32.gmra.mxu0 %v358
        %v422 = vpop.f32.mrf.mxu0
        %v423 = vadd.f32 %v308, %v422
        %424 = vmatmul.f32.gmra.mxu0 %v361
        %v425 = vpop.f32.mrf.mxu0
        %v426 = vadd.f32 %v308, %v425
        %427 = vdwg.mxu0
        %428 = vmatpush.msra.mxu0 0.0
        %429 = vmatpush.msra.mxu0 0.0
        %430 = vmatpush.msra.mxu0 0.0
        %431 = vmatpush.msra.mxu0 0.0
        %432 = vmatpush.msra.mxu0 0.0
        %433 = vmatpush.msra.mxu0 0.0
        %434 = vmatpush.msra.mxu0 0.0
        %435 = vmatpush.msra.mxu0 0.0
        %436 = vmatpush.msra.mxu0 0.0
        %437 = vmatpush.msra.mxu0 0.0
        %438 = vmatpush.msra.mxu0 0.0
        %439 = vmatpush.msra.mxu0 0.0
        %440 = vmatpush.msra.mxu0 %v304
        %441 = vmatpush.msra.mxu0 %v301
        %442 = vmatpush.msra.mxu0 %v298
        %443 = vmatpush.msra.mxu0 %v295
        %444 = vmatmul.f32.gmra.mxu0 %v316
        %v445 = vpop.f32.mrf.mxu0
        %v446 = vadd.f32 %v309, %v445
        %447 = vmatmul.f32.gmra.mxu0 %v319
        %v448 = vpop.f32.mrf.mxu0
        %v449 = vadd.f32 %v309, %v448
        %450 = vmatmul.f32.gmra.mxu0 %v322
        %v451 = vpop.f32.mrf.mxu0
        %v452 = vadd.f32 %v309, %v451
        %453 = vmatmul.f32.gmra.mxu0 %v325
        %v454 = vpop.f32.mrf.mxu0
        %v455 = vadd.f32 %v309, %v454
        %456 = vmatmul.f32.gmra.mxu0 %v328
        %v457 = vpop.f32.mrf.mxu0
        %v458 = vadd.f32 %v309, %v457
        %459 = vmatmul.f32.gmra.mxu0 %v331
        %v460 = vpop.f32.mrf.mxu0
        %v461 = vadd.f32 %v309, %v460
        %462 = vmatmul.f32.gmra.mxu0 %v334
        %v463 = vpop.f32.mrf.mxu0
        %v464 = vadd.f32 %v309, %v463
        %465 = vmatmul.f32.gmra.mxu0 %v337
        %v466 = vpop.f32.mrf.mxu0
        %v467 = vadd.f32 %v309, %v466
        %468 = vmatmul.f32.gmra.mxu0 %v340
        %v469 = vpop.f32.mrf.mxu0
        %v470 = vadd.f32 %v309, %v469
        %471 = vmatmul.f32.gmra.mxu0 %v343
        %v472 = vpop.f32.mrf.mxu0
        %v473 = vadd.f32 %v309, %v472
        %474 = vmatmul.f32.gmra.mxu0 %v346
        %v475 = vpop.f32.mrf.mxu0
        %v476 = vadd.f32 %v309, %v475
        %477 = vmatmul.f32.gmra.mxu0 %v349
        %v478 = vpop.f32.mrf.mxu0
        %v479 = vadd.f32 %v309, %v478
        %480 = vmatmul.f32.gmra.mxu0 %v352
        %v481 = vpop.f32.mrf.mxu0
        %v482 = vadd.f32 %v309, %v481
        %483 = vmatmul.f32.gmra.mxu0 %v355
        %v484 = vpop.f32.mrf.mxu0
        %v485 = vadd.f32 %v309, %v484
        %486 = vmatmul.f32.gmra.mxu0 %v358
        %v487 = vpop.f32.mrf.mxu0
        %v488 = vadd.f32 %v309, %v487
        %489 = vmatmul.f32.gmra.mxu0 %v361
        %v490 = vpop.f32.mrf.mxu0
        %v491 = vadd.f32 %v309, %v490
        %492 = vdwg.mxu0
        %493 = vmatpush.msra.mxu0 0.0
        %494 = vmatpush.msra.mxu0 0.0
        %495 = vmatpush.msra.mxu0 0.0
        %496 = vmatpush.msra.mxu0 0.0
        %497 = vmatpush.msra.mxu0 0.0
        %498 = vmatpush.msra.mxu0 0.0
        %499 = vmatpush.msra.mxu0 0.0
        %500 = vmatpush.msra.mxu0 0.0
        %501 = vmatpush.msra.mxu0 0.0
        %502 = vmatpush.msra.mxu0 0.0
        %503 = vmatpush.msra.mxu0 0.0
        %504 = vmatpush.msra.mxu0 0.0
        %505 = vmatpush.msra.mxu0 %v305
        %506 = vmatpush.msra.mxu0 %v302
        %507 = vmatpush.msra.mxu0 %v299
        %508 = vmatpush.msra.mxu0 %v296
        %509 = vmatmul.f32.gmra.mxu0 %v316
        %v510 = vpop.f32.mrf.mxu0
        %v511 = vadd.f32 %v310, %v510
        %512 = vmatmul.f32.gmra.mxu0 %v319
        %v513 = vpop.f32.mrf.mxu0
        %v514 = vadd.f32 %v310, %v513
        %515 = vmatmul.f32.gmra.mxu0 %v322
        %v516 = vpop.f32.mrf.mxu0
        %v517 = vadd.f32 %v310, %v516
        %518 = vmatmul.f32.gmra.mxu0 %v325
        %v519 = vpop.f32.mrf.mxu0
        %v520 = vadd.f32 %v310, %v519
        %521 = vmatmul.f32.gmra.mxu0 %v328
        %v522 = vpop.f32.mrf.mxu0
        %v523 = vadd.f32 %v310, %v522
        %524 = vmatmul.f32.gmra.mxu0 %v331
        %v525 = vpop.f32.mrf.mxu0
        %v526 = vadd.f32 %v310, %v525
        %527 = vmatmul.f32.gmra.mxu0 %v334
        %v528 = vpop.f32.mrf.mxu0
        %v529 = vadd.f32 %v310, %v528
        %530 = vmatmul.f32.gmra.mxu0 %v337
        %v531 = vpop.f32.mrf.mxu0
        %v532 = vadd.f32 %v310, %v531
        %533 = vmatmul.f32.gmra.mxu0 %v340
        %v534 = vpop.f32.mrf.mxu0
        %v535 = vadd.f32 %v310, %v534
        %536 = vmatmul.f32.gmra.mxu0 %v343
        %v537 = vpop.f32.mrf.mxu0
        %v538 = vadd.f32 %v310, %v537
        %539 = vmatmul.f32.gmra.mxu0 %v346
        %v540 = vpop.f32.mrf.mxu0
        %v541 = vadd.f32 %v310, %v540
        %542 = vmatmul.f32.gmra.mxu0 %v349
        %v543 = vpop.f32.mrf.mxu0
        %v544 = vadd.f32 %v310, %v543
        %545 = vmatmul.f32.gmra.mxu0 %v352
        %v546 = vpop.f32.mrf.mxu0
        %v547 = vadd.f32 %v310, %v546
        %548 = vmatmul.f32.gmra.mxu0 %v355
        %v549 = vpop.f32.mrf.mxu0
        %v550 = vadd.f32 %v310, %v549
        %551 = vmatmul.f32.gmra.mxu0 %v358
        %v552 = vpop.f32.mrf.mxu0
        %v553 = vadd.f32 %v310, %v552
        %554 = vmatmul.f32.gmra.mxu0 %v361
        %v555 = vpop.f32.mrf.mxu0
        %v556 = vadd.f32 %v310, %v555
        %557 = vdwg.mxu0
        %558 = vst [vmem:[%s250] sm:$0xff] %v381
        %559 = vst [vmem:[%s250 + $0x8] sm:$0xff] %v384
        %560 = vst [vmem:[%s250 + $0x10] sm:$0xff] %v387
        %561 = vst [vmem:[%s250 + $0x18] sm:$0xff] %v390
        %562 = vst [vmem:[%s250 + $0x20] sm:$0xff] %v393
        %563 = vst [vmem:[%s250 + $0x28] sm:$0xff] %v396
        %564 = vst [vmem:[%s250 + $0x30] sm:$0xff] %v399
        %565 = vst [vmem:[%s250 + $0x38] sm:$0xff] %v402
        %566 = vst [vmem:[%s250 + $0x40] sm:$0xff] %v405
        %567 = vst [vmem:[%s250 + $0x48] sm:$0xff] %v408
        %568 = vst [vmem:[%s250 + $0x50] sm:$0xff] %v411
        %569 = vst [vmem:[%s250 + $0x58] sm:$0xff] %v414
        %570 = vst [vmem:[%s250 + $0x60] sm:$0xff] %v417
        %571 = vst [vmem:[%s250 + $0x68] sm:$0xff] %v420
        %572 = vst [vmem:[%s250 + $0x70] sm:$0xff] %v423
        %573 = vst [vmem:[%s250 + $0x78] sm:$0xff] %v426
        %574 = vst [vmem:[%s257] sm:$0xff] %v446
        %575 = vst [vmem:[%s257 + $0x8] sm:$0xff] %v449
        %576 = vst [vmem:[%s257 + $0x10] sm:$0xff] %v452
        %577 = vst [vmem:[%s257 + $0x18] sm:$0xff] %v455
        %578 = vst [vmem:[%s257 + $0x20] sm:$0xff] %v458
        %579 = vst [vmem:[%s257 + $0x28] sm:$0xff] %v461
        %580 = vst [vmem:[%s257 + $0x30] sm:$0xff] %v464
        %581 = vst [vmem:[%s257 + $0x38] sm:$0xff] %v467
        %582 = vst [vmem:[%s257 + $0x40] sm:$0xff] %v470
        %583 = vst [vmem:[%s257 + $0x48] sm:$0xff] %v473
        %584 = vst [vmem:[%s257 + $0x50] sm:$0xff] %v476
        %585 = vst [vmem:[%s257 + $0x58] sm:$0xff] %v479
        %586 = vst [vmem:[%s257 + $0x60] sm:$0xff] %v482
        %587 = vst [vmem:[%s257 + $0x68] sm:$0xff] %v485
        %588 = vst [vmem:[%s257 + $0x70] sm:$0xff] %v488
        %589 = vst [vmem:[%s257 + $0x78] sm:$0xff] %v491
        %590 = vst [vmem:[%s264] sm:$0xff] %v511
        %591 = vst [vmem:[%s264 + $0x8] sm:$0xff] %v514
        %592 = vst [vmem:[%s264 + $0x10] sm:$0xff] %v517
        %593 = vst [vmem:[%s264 + $0x18] sm:$0xff] %v520
        %594 = vst [vmem:[%s264 + $0x20] sm:$0xff] %v523
        %595 = vst [vmem:[%s264 + $0x28] sm:$0xff] %v526
        %596 = vst [vmem:[%s264 + $0x30] sm:$0xff] %v529
        %597 = vst [vmem:[%s264 + $0x38] sm:$0xff] %v532
        %598 = vst [vmem:[%s264 + $0x40] sm:$0xff] %v535
        %599 = vst [vmem:[%s264 + $0x48] sm:$0xff] %v538
        %600 = vst [vmem:[%s264 + $0x50] sm:$0xff] %v541
        %601 = vst [vmem:[%s264 + $0x58] sm:$0xff] %v544
        %602 = vst [vmem:[%s264 + $0x60] sm:$0xff] %v547
        %603 = vst [vmem:[%s264 + $0x68] sm:$0xff] %v550
        %604 = vst [vmem:[%s264 + $0x70] sm:$0xff] %v553
        %605 = vst [vmem:[%s264 + $0x78] sm:$0xff] %v556
        %s606 = sand.u32 %s115, 1
        %s607 = scalar_lea.sflag [#allocation3], %s606
        %s608 = sand.u32 %s115, 1
        %s609 = smul.addr %s608, 128
        %s610 = scalar_lea.vmem [#allocation2], %s609
        %s611 = sand.u32 %s23, 1
        %s612 = scalar_lea.sflag [#allocation5], %s611
        %s613 = sand.u32 %s143, 1
        %s614 = smul.addr %s613, 128
        %s615 = scalar_lea.vmem [#allocation4], %s614
        %s616 = sand.u32 %s23, 1
        %s617 = scalar_lea.sflag [#allocation5], %s616
        %s618 = sand.u32 %s171, 1
        %s619 = smul.addr %s618, 128
        %s620 = scalar_lea.vmem [#allocation6], %s619
        // Predicated region
        $region33: #{tpu_custom_call.1} parent=31 // pred_check
          %p621 = pneg %p125
        $region34: #{tpu_custom_call.1} parent=31 // pred_check_branch
          %623 = sbr.rel (%p621) target = $region36
        $region35: #{tpu_custom_call.1} parent=31 // pred_region
          %s624 = smul.u32 16, %s28
          %626 = vsyncadd %s607, 0
          %s627 = smul.addr %s27, 16
          %s628 = sadd.s32 %s624, %s627
          %s629 = smul.addr %s628, 8
          %s630 = scalar_lea.hbm %s3, %s629
          %s631 = sshll.u32 %s610, 4
          %s632 = int_to_ptr.vmem [resolvable:$true] %s631
          %s633 = sshll.u32 %s630, 4
          %s634 = int_to_ptr.hbm [resolvable:$true] %s633
          %639 = dma.vmem_to_hbm [thread:$0]  %s632, 2048, %s634, %s607, 128, 128, 8
        $region36: #{tpu_custom_call.1} parent=31 // pred_fallthru
          _
        // Predicated region
        $region37: #{tpu_custom_call.1} parent=31 // pred_check
          %p640 = pneg %p153
        $region38: #{tpu_custom_call.1} parent=31 // pred_check_branch
          %642 = sbr.rel (%p640) target = $region40
        $region39: #{tpu_custom_call.1} parent=31 // pred_region
          %s643 = smul.u32 16, %s28
          %645 = vsyncadd %s612, 0
          %s646 = smul.addr %s27, 16
          %s647 = sadd.s32 %s643, %s646
          %s648 = smul.addr %s647, 8
          %s649 = scalar_lea.hbm %s4, %s648
          %s650 = sshll.u32 %s615, 4
          %s651 = int_to_ptr.vmem [resolvable:$true] %s650
          %s652 = sshll.u32 %s649, 4
          %s653 = int_to_ptr.hbm [resolvable:$true] %s652
          %658 = dma.vmem_to_hbm [thread:$0]  %s651, 2048, %s653, %s612, 128, 128, 8
        $region40: #{tpu_custom_call.1} parent=31 // pred_fallthru
          _
        // Predicated region
        $region41: #{tpu_custom_call.1} parent=31 // pred_check
          %p659 = pneg %p181
        $region42: #{tpu_custom_call.1} parent=31 // pred_check_branch
          %661 = sbr.rel (%p659) target = $region44
        $region43: #{tpu_custom_call.1} parent=31 // pred_region
          %s662 = smul.u32 16, %s28
          %664 = vsyncadd %s617, 0
          %s665 = smul.addr %s27, 16
          %s666 = sadd.s32 %s662, %s665
          %s667 = smul.addr %s666, 8
          %s668 = scalar_lea.hbm %s5, %s667
          %s669 = sshll.u32 %s620, 4
          %s670 = int_to_ptr.vmem [resolvable:$true] %s669
          %s671 = sshll.u32 %s668, 4
          %s672 = int_to_ptr.hbm [resolvable:$true] %s671
          %677 = dma.vmem_to_hbm [thread:$0]  %s670, 2048, %s672, %s617, 128, 128, 8
        $region44: #{tpu_custom_call.1} parent=31 // pred_fallthru
          _
      $region32: #{tpu_custom_call.1} parent=5 // pred_fallthru
        _
      %p678 = scmp.le.s32.totalorder 2, %s18
      // Predicated region
      $region45: #{tpu_custom_call.1} parent=5 // pred_check
        %p679 = pneg %p678
      $region46: #{tpu_custom_call.1} parent=5 // pred_check_branch
        %681 = sbr.rel (%p679) target = $region48
      $region47: #{tpu_custom_call.1} parent=5 // pred_region
        %s682 = ssub.s32 %s18, 2
        // Predicated region
        $region49: #{tpu_custom_call.1} parent=47 // pred_check
          %p683 = pneg %p131
        $region50: #{tpu_custom_call.1} parent=47 // pred_check_branch
          %685 = sbr.rel (%p683) target = $region52
        $region51: #{tpu_custom_call.1} parent=47 // pred_region
          %s686 = sand.u32 %s116, 1
          %s687 = scalar_lea.sflag [#allocation3], %s686
          %s688 = sand.u32 %s116, 1
          %s689 = smul.addr %s688, 128
          %s690 = scalar_lea.vmem [#allocation2], %s689
          %692 = dma.done %s687, 2048
        $region52: #{tpu_custom_call.1} parent=47 // pred_fallthru
          _
        // Predicated region
        $region53: #{tpu_custom_call.1} parent=47 // pred_check
          %p693 = pneg %p159
        $region54: #{tpu_custom_call.1} parent=47 // pred_check_branch
          %695 = sbr.rel (%p693) target = $region56
        $region55: #{tpu_custom_call.1} parent=47 // pred_region
          %s696 = sand.u32 %s24, 1
          %s697 = scalar_lea.sflag [#allocation5], %s696
          %s698 = sand.u32 %s144, 1
          %s699 = smul.addr %s698, 128
          %s700 = scalar_lea.vmem [#allocation4], %s699
          %702 = dma.done %s697, 2048
        $region56: #{tpu_custom_call.1} parent=47 // pred_fallthru
          _
        // Predicated region
        $region57: #{tpu_custom_call.1} parent=47 // pred_check
          %p703 = pneg %p187
        $region58: #{tpu_custom_call.1} parent=47 // pred_check_branch
          %705 = sbr.rel (%p703) target = $region60
        $region59: #{tpu_custom_call.1} parent=47 // pred_region
          %s706 = sand.u32 %s24, 1
          %s707 = scalar_lea.sflag [#allocation5], %s706
          %s708 = sand.u32 %s172, 1
          %s709 = smul.addr %s708, 128
          %s710 = scalar_lea.vmem [#allocation6], %s709
          %712 = dma.done %s707, 2048
        $region60: #{tpu_custom_call.1} parent=47 // pred_fallthru
          _
      $region48: #{tpu_custom_call.1} parent=5 // pred_fallthru
        _
    $region6: #{tpu_custom_call.1} parent=1 // loop_footer
      %s22 = sadd.s32 1, %s18
    $region7: #{tpu_custom_call.1} parent=1 // loop_footer_branch
      %17 = sbr.rel target = $region3
    $region8: #{tpu_custom_call.1} parent=1 // loop_exit
      _
    %713 = vsyncpa [#allocation3], 1
    %s714 = scalar_lea.sflag [#allocation3], 1
    %715 = vsyncpa %s714, 1
    %716 = vsyncpa [#allocation5], 1
    %s717 = scalar_lea.sflag [#allocation5], 1
    %718 = vsyncpa %s717, 1

</llo_original>
